<compile_context>
chip_gen: v7x
topology: tpu7x:2x2x1
jax: 0.10.0
libtpu: 0.0.40
codegen_flags: <defaults>
</compile_context>

<pallas_src>
import jax
import jax.numpy as jnp
from jax.experimental import pallas as pl
from jax.experimental.pallas import tpu as pltpu

_SUBLANES = 8     # f32 sublane tiling
_LANES = 128      # vreg lane width


def _round_up(a: int, b: int) -> int:
    return ((a + b - 1) // b) * b


def _vmem_capacity_bytes() -> int:
    """Physical VMEM per TensorCore; conservative default if query fails."""
    try:
        cap = getattr(pltpu.get_tpu_info(), "vmem_capacity_bytes", None)
        if cap:
            return int(cap)
    except Exception:
        pass
    return 64 * 1024 * 1024  # v7x-sized default (safe on every generation)


def _xla_centered(x: jax.Array) -> jax.Array:
    mean = jnp.mean(x, dtype=jnp.float32)
    return (x.astype(jnp.float32) - mean).astype(x.dtype)


# ---------------------------------------------------------------------------
# Kernels
# ---------------------------------------------------------------------------
def _single_pass_kernel(x_ref, o_ref):
    # Whole array resident in VMEM: reduce the mean in-kernel (f32, two-level
    # sum) and subtract in the same pass (1 HBM read + 1 write total).
    x = x_ref[...].astype(jnp.float32)
    row_sums = jnp.sum(x, axis=-1, keepdims=True)     # lane reduction (XLU)
    mean = jnp.sum(row_sums) / x.size                 # sublane/row reduction
    o_ref[...] = (x - mean).astype(o_ref.dtype)


def _subtract_mean_kernel(mean_ref, x_ref, o_ref):
    # mean_ref: (1,) f32 in SMEM (global mean, precomputed in the wrapper).
    # x_ref / o_ref: (block_m, N) VMEM tiles (final block may be ragged).
    x = x_ref[...].astype(jnp.float32)
    o_ref[...] = (x - mean_ref[0]).astype(o_ref.dtype)


# ---------------------------------------------------------------------------
# Wrapper
# ---------------------------------------------------------------------------
def centered_layer(
    x: jax.Array,
    *,
    block_m: int | None = None,
    xla_fallback_max_bytes: int = 64 * 1024,
    single_pass_max_bytes: int | None = None,
) -> jax.Array:
    """X - X.mean() over all elements (matches torch's X.mean() with no dim)."""
    orig_shape = x.shape
    n = x.size
    if n == 0:
        return x
    dtype = x.dtype
    itemsize = jnp.dtype(dtype).itemsize
    nbytes = n * itemsize

    # --- Tiny tensors: XLA fusion beats the pallas_call fixed cost. ---------
    if nbytes <= xla_fallback_max_bytes:
        return _xla_centered(x)

    # --- View as a 2-D (M, N) slab WITHOUT copying. --------------------------
    #  * ndim >= 2: collapse leading dims (layout of the last dim unchanged).
    #  * 1-D with n % 128 == 0: free lane-dense split.
    #  * otherwise: plain XLA (never pay pad/slice round-trips through HBM).
    if x.ndim >= 2:
        N = orig_shape[-1]
        M = n // N
    elif n % _LANES == 0:
        N = _LANES
        M = n // _LANES
    else:
        return _xla_centered(x)
    x2d = x.reshape(M, N)

    row_bytes = N * itemsize
    vmem_cap = _vmem_capacity_bytes()
    # Scoped-VMEM request: leave headroom for compiler scratch; cap at 96 MiB
    # (v5e/v6e have 128 MiB physical; v7x only 64 MiB -> 48 MiB limit).
    vmem_limit = min(vmem_cap * 3 // 4, 96 * 1024 * 1024)

    # --- Single-pass path: whole array resident in VMEM. --------------------
    if single_pass_max_bytes is None:
        # Budget for in + out buffers, possible double-buffering, and the f32
        # compute temporary for narrow dtypes.
        single_pass_max_bytes = vmem_limit // 6
    if nbytes <= single_pass_max_bytes:
        out2d = pl.pallas_call(
            _single_pass_kernel,
            out_shape=jax.ShapeDtypeStruct((M, N), dtype),
            grid=(1,),
            in_specs=[pl.BlockSpec((M, N), lambda i: (0, 0))],
            out_specs=pl.BlockSpec((M, N), lambda i: (0, 0)),
            compiler_params=pltpu.CompilerParams(vmem_limit_bytes=vmem_limit),
            cost_estimate=pl.CostEstimate(
                flops=2 * n, transcendentals=0, bytes_accessed=2 * nbytes),
        )(x2d)
        return out2d.reshape(orig_shape)

    # --- Tiled path: mean reduced once in XLA (f32), kernel is a pure tiled
    #     elementwise subtract with double-buffered DMA. ----------------------
    if block_m is None:
        target_tile_bytes = 4 * 1024 * 1024            # ~85% of HBM roofline
        bm = max(_SUBLANES, target_tile_bytes // max(row_bytes, 1))
        # Prefer >= 8 tiles so the "parallel" axis feeds both v7x TensorCores.
        bm = min(bm, max(_SUBLANES, pl.cdiv(M, 8)))
        block_m = _round_up(int(bm), _SUBLANES)
    else:
        block_m = _round_up(int(block_m), _SUBLANES)
    block_m = min(block_m, _round_up(M, _SUBLANES))
    if block_m >= M:
        block_m = M  # full-extent block: no (8,128) alignment requirement.

    # If even a minimal tile would blow the VMEM budget (enormous last dim),
    # don't fight it — XLA handles that fine.
    tile_bytes = block_m * row_bytes
    if 4 * tile_bytes > vmem_limit - (4 << 20):
        return _xla_centered(x)

    # Global mean with explicit f32 accumulation (safe for bf16/fp8 inputs).
    mean = jnp.mean(x, dtype=jnp.float32).reshape(1)

    grid = (pl.cdiv(M, block_m),)   # ragged final block is masked by Pallas.
    out2d = pl.pallas_call(
        _subtract_mean_kernel,
        out_shape=jax.ShapeDtypeStruct((M, N), dtype),
        grid=grid,
        in_specs=[
            # Global mean: whole (1,) f32 array, untiled, in SMEM.
            pl.BlockSpec(memory_space=pltpu.MemorySpace.SMEM),
            # Row-tiled input (last dim kept whole -> full-lane stores when
            # N is a multiple of 128).
            pl.BlockSpec((block_m, N), lambda i: (i, 0)),
        ],
        out_specs=pl.BlockSpec((block_m, N), lambda i: (i, 0)),
        compiler_params=pltpu.CompilerParams(
            # Tiles are independent (mean precomputed) -> shard across TCs.
            dimension_semantics=("parallel",),
            vmem_limit_bytes=vmem_limit,
        ),
        cost_estimate=pl.CostEstimate(
            flops=n, transcendentals=0, bytes_accessed=2 * nbytes + 4),
    )(mean, x2d)
    return out2d.reshape(orig_shape)


# ---------------------------------------------------------------------------
# Self-test
# ---------------------------------------------------------------------------
if __name__ == "__main__":
    key = jax.random.PRNGKey(0)
    k1, k2, k3 = jax.random.split(key, 3)

    # 1) Tiny input consistent with the module (batch=8, hidden=32): takes the
    #    XLA-fallback path (pallas_call fixed cost would dominate here).
    x_small = jax.random.normal(k1, (8, 32), dtype=jnp.float32)
    out_small = jax.block_until_ready(centered_layer(x_small))
    ref_small = x_small - jnp.mean(x_small)
    assert out_small.shape == x_small.shape and out_small.dtype == x_small.dtype
    assert jnp.allclose(out_small, ref_small, atol=1e-5, rtol=1e-5), "small mismatch"
    assert abs(float(jnp.mean(out_small))) < 1e-5

    # 2) Medium input (512x256 f32 = 512 KiB): single-pass in-VMEM kernel
    #    (mean reduced inside the kernel; one HBM read + one write).
    x_mid = jax.random.normal(k2, (512, 256), dtype=jnp.float32)
    out_mid = jax.block_until_ready(centered_layer(x_mid))
    ref_mid = x_mid - jnp.mean(x_mid)
    assert out_mid.shape == x_mid.shape and out_mid.dtype == x_mid.dtype
    assert jnp.allclose(out_mid, ref_mid, atol=1e-5, rtol=1e-5), "single-pass mismatch"

    # 3) Force the tiled path (SMEM mean + multi-tile grid + ragged final
    #    block: 200 rows, block_m=64 -> grid of 4, last tile 8 rows).
    x_big = jax.random.normal(k3, (200, 256), dtype=jnp.float32)
    out_big = jax.block_until_ready(
        centered_layer(x_big, block_m=64, single_pass_max_bytes=0))
    ref_big = x_big - jnp.mean(x_big)
    assert out_big.shape == x_big.shape and out_big.dtype == x_big.dtype
    assert jnp.allclose(out_big, ref_big, atol=1e-5, rtol=1e-5), "tiled mismatch"

    print("KERNEL_OK")
</pallas_src>

<mosaic_0001>
module attributes {stable_mosaic.version = 11 : i64} {
  func.func @_single_pass_kernel(%arg0: i32, %arg1: memref<512x256xf32, #tpu.memory_space<vmem>>, %arg2: memref<512x256xf32, #tpu.memory_space<vmem>>) attributes {dimension_semantics = [#tpu.dimension_semantics<arbitrary>], iteration_bounds = array<i64: 1>, scalar_prefetch = 0 : i64, scratch_operands = 0 : i64, tpu.core_type = #tpu.core_type<tc>, window_params = [{pipeline_mode = #tpu.pipeline_mode<synchronous>, transform_indices = @transform_0, window_bounds = array<i64: 512, 256>}, {pipeline_mode = #tpu.pipeline_mode<synchronous>, transform_indices = @transform_1, window_bounds = array<i64: 512, 256>}]} {
    %c0 = arith.constant 0 : index
    %c0_0 = arith.constant 0 : index
    %0 = vector.load %arg1[%c0, %c0_0] : memref<512x256xf32, #tpu.memory_space<vmem>>, vector<512x256xf32>
    %cst = arith.constant dense<0.000000e+00> : vector<512xf32>
    %1 = vector.multi_reduction <add>, %0, %cst [1] : vector<512x256xf32> to vector<512xf32>
    %2 = vector.shape_cast %1 : vector<512xf32> to vector<512x1xf32>
    %3 = vector.shape_cast %2 : vector<512x1xf32> to vector<1x512x1xf32>
    %cst_1 = arith.constant dense<0.000000e+00> : vector<1xf32>
    %4 = vector.multi_reduction <add>, %3, %cst_1 [1, 2] : vector<1x512x1xf32> to vector<1xf32>
    %5 = vector.shape_cast %4 : vector<1xf32> to vector<1x1x1xf32>
    %6 = vector.extract %5[0, 0, 0] : f32 from vector<1x1x1xf32>
    %cst_2 = arith.constant 1.310720e+05 : f32
    %7 = arith.divf %6, %cst_2 : f32
    %8 = vector.broadcast %7 : f32 to vector<512x256xf32>
    %9 = arith.subf %0, %8 : vector<512x256xf32>
    %c0_3 = arith.constant 0 : index
    %c0_4 = arith.constant 0 : index
    %10 = vector.load %arg2[%c0_3, %c0_4] : memref<512x256xf32, #tpu.memory_space<vmem>>, vector<512x256xf32>
    tpu.vector_store %arg2[%c0_3, %c0_4], %9 {strides = array<i32>} : memref<512x256xf32, #tpu.memory_space<vmem>>, vector<512x256xf32>,
    return
  }
  func.func @transform_0(%arg0: i32) -> (i32, i32) {
    %c0_i32 = arith.constant 0 : i32
    %c0_i32_0 = arith.constant 0 : i32
    %c0_i32_1 = arith.constant 0 : i32
    return %c0_i32, %c0_i32_0 : i32, i32
  }
  func.func @transform_1(%arg0: i32) -> (i32, i32) {
    %c0_i32 = arith.constant 0 : i32
    %c0_i32_0 = arith.constant 0 : i32
    %c0_i32_1 = arith.constant 0 : i32
    return %c0_i32, %c0_i32_0 : i32, i32
  }
}

</mosaic_0001>

<llo_original>
// kernel: tpu_custom_call.1
$region0: #{tpu_custom_call.1}
  #allocation0 [shape = 'u32[]', space=smem, size = 0x4, offset = 0x4, fixed_abs, tag = 'smem constant byte address 0x4 - core index']
  #allocation1 [shape = 'u32[144,128]{1,0:T(1,128)}', space=vmem, size = 0x12000, scoped, tag = 'internal scratch']
  %s0 = inlined_call_operand.hbm [shape: f32[512,256], index: 0, kind: input, shape index: {}]
  %s1 = inlined_call_operand.hbm [shape: f32[512,256], index: 1, kind: output, shape index: {}]
  %s2 = sld [smem:[#allocation0]]
  $region18: #{tpu_custom_call.1} parent=0
    _
  %s4 = ssub.s32 1, %s2
  %s5 = scalar_select 0, %s4, %s2
  $region1: #{tpu_custom_call.1} parent=0
    #allocation2 [shape = 'u8[524288]{0}', space=vmem, size = 0x80000, scoped, tag = 'input window, operand 0, single buffered']
    #allocation3 [shape = 's32[1]{0}', space=sflag, size = 0x4, scoped, tag = 'scoped memory for tpu_custom_call.1']
    #allocation4 [shape = 's32[1]{0}', space=sflag, size = 0x4, scoped, tag = 'scoped memory for tpu_custom_call.1']
    #allocation5 [shape = 'u8[524288]{0}', space=vmem, size = 0x80000, scoped, tag = 'output window, operand 0, single buffered']
    %6 = vsyncpa [#allocation3], 0
    %7 = vsyncpa [#allocation4], 0
    // Predicated region
    $region2: #{tpu_custom_call.1} parent=1 // pred_check
      _
    $region3: #{tpu_custom_call.1} parent=1 // pred_check_branch
      %9 = sbr.rel (0) target = $region5
    $region4: #{tpu_custom_call.1} parent=1 // pred_region
      %s11 = ssub.s32 16384, 16384
      %12 = vsyncadd [#allocation3], %s11
      %s13 = sshll.u32 [#allocation2], 4
      %s14 = int_to_ptr.vmem [resolvable:$true] %s13
      %19 = dma.hbm_to_vmem [thread:$0]  %s0, 16384, %s14, [#allocation3], 256, 256, 16
    $region5: #{tpu_custom_call.1} parent=1 // pred_fallthru
      _
    // Predicated region
    $region6: #{tpu_custom_call.1} parent=1 // pred_check
      _
    $region7: #{tpu_custom_call.1} parent=1 // pred_check_branch
      %21 = sbr.rel (0) target = $region9
    $region8: #{tpu_custom_call.1} parent=1 // pred_region
      %22 = dma.done [#allocation3], 16384
    $region9: #{tpu_custom_call.1} parent=1 // pred_fallthru
      _
    %v23 = vld [vmem:[#allocation2] sm:$0xff]
    %v24 = vld [vmem:[#allocation2 + $0x8] sm:$0xff]
    %v25 = vld [vmem:[#allocation2 + $0x10] sm:$0xff]
    %v26 = vld [vmem:[#allocation2 + $0x18] sm:$0xff]
    %v27 = vld [vmem:[#allocation2 + $0x20] sm:$0xff]
    %v28 = vld [vmem:[#allocation2 + $0x28] sm:$0xff]
    %v29 = vld [vmem:[#allocation2 + $0x30] sm:$0xff]
    %v30 = vld [vmem:[#allocation2 + $0x38] sm:$0xff]
    %v31 = vld [vmem:[#allocation2 + $0x40] sm:$0xff]
    %v32 = vld [vmem:[#allocation2 + $0x48] sm:$0xff]
    %v33 = vld [vmem:[#allocation2 + $0x50] sm:$0xff]
    %v34 = vld [vmem:[#allocation2 + $0x58] sm:$0xff]
    %v35 = vld [vmem:[#allocation2 + $0x60] sm:$0xff]
    %v36 = vld [vmem:[#allocation2 + $0x68] sm:$0xff]
    %v37 = vld [vmem:[#allocation2 + $0x70] sm:$0xff]
    %v38 = vld [vmem:[#allocation2 + $0x78] sm:$0xff]
    %v39 = vld [vmem:[#allocation2 + $0x80] sm:$0xff]
    %v40 = vld [vmem:[#allocation2 + $0x88] sm:$0xff]
    %v41 = vld [vmem:[#allocation2 + $0x90] sm:$0xff]
    %v42 = vld [vmem:[#allocation2 + $0x98] sm:$0xff]
    %v43 = vld [vmem:[#allocation2 + $0xa0] sm:$0xff]
    %v44 = vld [vmem:[#allocation2 + $0xa8] sm:$0xff]
    %v45 = vld [vmem:[#allocation2 + $0xb0] sm:$0xff]
    %v46 = vld [vmem:[#allocation2 + $0xb8] sm:$0xff]
    %v47 = vld [vmem:[#allocation2 + $0xc0] sm:$0xff]
    %v48 = vld [vmem:[#allocation2 + $0xc8] sm:$0xff]
    %v49 = vld [vmem:[#allocation2 + $0xd0] sm:$0xff]
    %v50 = vld [vmem:[#allocation2 + $0xd8] sm:$0xff]
    %v51 = vld [vmem:[#allocation2 + $0xe0] sm:$0xff]
    %v52 = vld [vmem:[#allocation2 + $0xe8] sm:$0xff]
    %v53 = vld [vmem:[#allocation2 + $0xf0] sm:$0xff]
    %v54 = vld [vmem:[#allocation2 + $0xf8] sm:$0xff]
    %v55 = vld [vmem:[#allocation2 + $0x100] sm:$0xff]
    %v56 = vld [vmem:[#allocation2 + $0x108] sm:$0xff]
    %v57 = vld [vmem:[#allocation2 + $0x110] sm:$0xff]
    %v58 = vld [vmem:[#allocation2 + $0x118] sm:$0xff]
    %v59 = vld [vmem:[#allocation2 + $0x120] sm:$0xff]
    %v60 = vld [vmem:[#allocation2 + $0x128] sm:$0xff]
    %v61 = vld [vmem:[#allocation2 + $0x130] sm:$0xff]
    %v62 = vld [vmem:[#allocation2 + $0x138] sm:$0xff]
    %v63 = vld [vmem:[#allocation2 + $0x140] sm:$0xff]
    %v64 = vld [vmem:[#allocation2 + $0x148] sm:$0xff]
    %v65 = vld [vmem:[#allocation2 + $0x150] sm:$0xff]
    %v66 = vld [vmem:[#allocation2 + $0x158] sm:$0xff]
    %v67 = vld [vmem:[#allocation2 + $0x160] sm:$0xff]
    %v68 = vld [vmem:[#allocation2 + $0x168] sm:$0xff]
    %v69 = vld [vmem:[#allocation2 + $0x170] sm:$0xff]
    %v70 = vld [vmem:[#allocation2 + $0x178] sm:$0xff]
    %v71 = vld [vmem:[#allocation2 + $0x180] sm:$0xff]
    %v72 = vld [vmem:[#allocation2 + $0x188] sm:$0xff]
    %v73 = vld [vmem:[#allocation2 + $0x190] sm:$0xff]
    %v74 = vld [vmem:[#allocation2 + $0x198] sm:$0xff]
    %v75 = vld [vmem:[#allocation2 + $0x1a0] sm:$0xff]
    %v76 = vld [vmem:[#allocation2 + $0x1a8] sm:$0xff]
    %v77 = vld [vmem:[#allocation2 + $0x1b0] sm:$0xff]
    %v78 = vld [vmem:[#allocation2 + $0x1b8] sm:$0xff]
    %v79 = vld [vmem:[#allocation2 + $0x1c0] sm:$0xff]
    %v80 = vld [vmem:[#allocation2 + $0x1c8] sm:$0xff]
    %v81 = vld [vmem:[#allocation2 + $0x1d0] sm:$0xff]
    %v82 = vld [vmem:[#allocation2 + $0x1d8] sm:$0xff]
    %v83 = vld [vmem:[#allocation2 + $0x1e0] sm:$0xff]
    %v84 = vld [vmem:[#allocation2 + $0x1e8] sm:$0xff]
    %v85 = vld [vmem:[#allocation2 + $0x1f0] sm:$0xff]
    %v86 = vld [vmem:[#allocation2 + $0x1f8] sm:$0xff]
    %v87 = vld [vmem:[#allocation2 + $0x200] sm:$0xff]
    %v88 = vld [vmem:[#allocation2 + $0x208] sm:$0xff]
    %v89 = vld [vmem:[#allocation2 + $0x210] sm:$0xff]
    %v90 = vld [vmem:[#allocation2 + $0x218] sm:$0xff]
    %v91 = vld [vmem:[#allocation2 + $0x220] sm:$0xff]
    %v92 = vld [vmem:[#allocation2 + $0x228] sm:$0xff]
    %v93 = vld [vmem:[#allocation2 + $0x230] sm:$0xff]
    %v94 = vld [vmem:[#allocation2 + $0x238] sm:$0xff]
    %v95 = vld [vmem:[#allocation2 + $0x240] sm:$0xff]
    %v96 = vld [vmem:[#allocation2 + $0x248] sm:$0xff]
    %v97 = vld [vmem:[#allocation2 + $0x250] sm:$0xff]
    %v98 = vld [vmem:[#allocation2 + $0x258] sm:$0xff]
    %v99 = vld [vmem:[#allocation2 + $0x260] sm:$0xff]
    %v100 = vld [vmem:[#allocation2 + $0x268] sm:$0xff]
    %v101 = vld [vmem:[#allocation2 + $0x270] sm:$0xff]
    %v102 = vld [vmem:[#allocation2 + $0x278] sm:$0xff]
    %v103 = vld [vmem:[#allocation2 + $0x280] sm:$0xff]
    %v104 = vld [vmem:[#allocation2 + $0x288] sm:$0xff]
    %v105 = vld [vmem:[#allocation2 + $0x290] sm:$0xff]
    %v106 = vld [vmem:[#allocation2 + $0x298] sm:$0xff]
    %v107 = vld [vmem:[#allocation2 + $0x2a0] sm:$0xff]
    %v108 = vld [vmem:[#allocation2 + $0x2a8] sm:$0xff]
    %v109 = vld [vmem:[#allocation2 + $0x2b0] sm:$0xff]
    %v110 = vld [vmem:[#allocation2 + $0x2b8] sm:$0xff]
    %v111 = vld [vmem:[#allocation2 + $0x2c0] sm:$0xff]
    %v112 = vld [vmem:[#allocation2 + $0x2c8] sm:$0xff]
    %v113 = vld [vmem:[#allocation2 + $0x2d0] sm:$0xff]
    %v114 = vld [vmem:[#allocation2 + $0x2d8] sm:$0xff]
    %v115 = vld [vmem:[#allocation2 + $0x2e0] sm:$0xff]
    %v116 = vld [vmem:[#allocation2 + $0x2e8] sm:$0xff]
    %v117 = vld [vmem:[#allocation2 + $0x2f0] sm:$0xff]
    %v118 = vld [vmem:[#allocation2 + $0x2f8] sm:$0xff]
    %v119 = vld [vmem:[#allocation2 + $0x300] sm:$0xff]
    %v120 = vld [vmem:[#allocation2 + $0x308] sm:$0xff]
    %v121 = vld [vmem:[#allocation2 + $0x310] sm:$0xff]
    %v122 = vld [vmem:[#allocation2 + $0x318] sm:$0xff]
    %v123 = vld [vmem:[#allocation2 + $0x320] sm:$0xff]
    %v124 = vld [vmem:[#allocation2 + $0x328] sm:$0xff]
    %v125 = vld [vmem:[#allocation2 + $0x330] sm:$0xff]
    %v126 = vld [vmem:[#allocation2 + $0x338] sm:$0xff]
    %v127 = vld [vmem:[#allocation2 + $0x340] sm:$0xff]
    %v128 = vld [vmem:[#allocation2 + $0x348] sm:$0xff]
    %v129 = vld [vmem:[#allocation2 + $0x350] sm:$0xff]
    %v130 = vld [vmem:[#allocation2 + $0x358] sm:$0xff]
    %v131 = vld [vmem:[#allocation2 + $0x360] sm:$0xff]
    %v132 = vld [vmem:[#allocation2 + $0x368] sm:$0xff]
    %v133 = vld [vmem:[#allocation2 + $0x370] sm:$0xff]
    %v134 = vld [vmem:[#allocation2 + $0x378] sm:$0xff]
    %v135 = vld [vmem:[#allocation2 + $0x380] sm:$0xff]
    %v136 = vld [vmem:[#allocation2 + $0x388] sm:$0xff]
    %v137 = vld [vmem:[#allocation2 + $0x390] sm:$0xff]
    %v138 = vld [vmem:[#allocation2 + $0x398] sm:$0xff]
    %v139 = vld [vmem:[#allocation2 + $0x3a0] sm:$0xff]
    %v140 = vld [vmem:[#allocation2 + $0x3a8] sm:$0xff]
    %v141 = vld [vmem:[#allocation2 + $0x3b0] sm:$0xff]
    %v142 = vld [vmem:[#allocation2 + $0x3b8] sm:$0xff]
    %v143 = vld [vmem:[#allocation2 + $0x3c0] sm:$0xff]
    %v144 = vld [vmem:[#allocation2 + $0x3c8] sm:$0xff]
    %v145 = vld [vmem:[#allocation2 + $0x3d0] sm:$0xff]
    %v146 = vld [vmem:[#allocation2 + $0x3d8] sm:$0xff]
    %v147 = vld [vmem:[#allocation2 + $0x3e0] sm:$0xff]
    %v148 = vld [vmem:[#allocation2 + $0x3e8] sm:$0xff]
    %v149 = vld [vmem:[#allocation2 + $0x3f0] sm:$0xff]
    %v150 = vld [vmem:[#allocation2 + $0x3f8] sm:$0xff]
    %v151 = vadd.f32 %v23, %v24
    %152 = vadd.xlane.f32.xlu0 %v151
    %v153 = vpop.xlane.xlu0 %152
    %v154 = vadd.f32 %v25, %v26
    %155 = vadd.xlane.f32.xlu0 %v154
    %v156 = vpop.xlane.xlu0 %155
    %v157 = vadd.f32 %v27, %v28
    %158 = vadd.xlane.f32.xlu0 %v157
    %v159 = vpop.xlane.xlu0 %158
    %v160 = vadd.f32 %v29, %v30
    %161 = vadd.xlane.f32.xlu0 %v160
    %v162 = vpop.xlane.xlu0 %161
    %v163 = vadd.f32 %v31, %v32
    %164 = vadd.xlane.f32.xlu0 %v163
    %v165 = vpop.xlane.xlu0 %164
    %v166 = vadd.f32 %v33, %v34
    %167 = vadd.xlane.f32.xlu0 %v166
    %v168 = vpop.xlane.xlu0 %167
    %v169 = vadd.f32 %v35, %v36
    %170 = vadd.xlane.f32.xlu0 %v169
    %v171 = vpop.xlane.xlu0 %170
    %v172 = vadd.f32 %v37, %v38
    %173 = vadd.xlane.f32.xlu0 %v172
    %v174 = vpop.xlane.xlu0 %173
    %v175 = vadd.f32 %v39, %v40
    %176 = vadd.xlane.f32.xlu0 %v175
    %v177 = vpop.xlane.xlu0 %176
    %v178 = vadd.f32 %v41, %v42
    %179 = vadd.xlane.f32.xlu0 %v178
    %v180 = vpop.xlane.xlu0 %179
    %v181 = vadd.f32 %v43, %v44
    %182 = vadd.xlane.f32.xlu0 %v181
    %v183 = vpop.xlane.xlu0 %182
    %v184 = vadd.f32 %v45, %v46
    %185 = vadd.xlane.f32.xlu0 %v184
    %v186 = vpop.xlane.xlu0 %185
    %v187 = vadd.f32 %v47, %v48
    %188 = vadd.xlane.f32.xlu0 %v187
    %v189 = vpop.xlane.xlu0 %188
    %v190 = vadd.f32 %v49, %v50
    %191 = vadd.xlane.f32.xlu0 %v190
    %v192 = vpop.xlane.xlu0 %191
    %v193 = vadd.f32 %v51, %v52
    %194 = vadd.xlane.f32.xlu0 %v193
    %v195 = vpop.xlane.xlu0 %194
    %v196 = vadd.f32 %v53, %v54
    %197 = vadd.xlane.f32.xlu0 %v196
    %v198 = vpop.xlane.xlu0 %197
    %v199 = vadd.f32 %v55, %v56
    %200 = vadd.xlane.f32.xlu0 %v199
    %v201 = vpop.xlane.xlu0 %200
    %v202 = vadd.f32 %v57, %v58
    %203 = vadd.xlane.f32.xlu0 %v202
    %v204 = vpop.xlane.xlu0 %203
    %v205 = vadd.f32 %v59, %v60
    %206 = vadd.xlane.f32.xlu0 %v205
    %v207 = vpop.xlane.xlu0 %206
    %v208 = vadd.f32 %v61, %v62
    %209 = vadd.xlane.f32.xlu0 %v208
    %v210 = vpop.xlane.xlu0 %209
    %v211 = vadd.f32 %v63, %v64
    %212 = vadd.xlane.f32.xlu0 %v211
    %v213 = vpop.xlane.xlu0 %212
    %v214 = vadd.f32 %v65, %v66
    %215 = vadd.xlane.f32.xlu0 %v214
    %v216 = vpop.xlane.xlu0 %215
    %v217 = vadd.f32 %v67, %v68
    %218 = vadd.xlane.f32.xlu0 %v217
    %v219 = vpop.xlane.xlu0 %218
    %v220 = vadd.f32 %v69, %v70
    %221 = vadd.xlane.f32.xlu0 %v220
    %v222 = vpop.xlane.xlu0 %221
    %v223 = vadd.f32 %v71, %v72
    %224 = vadd.xlane.f32.xlu0 %v223
    %v225 = vpop.xlane.xlu0 %224
    %v226 = vadd.f32 %v73, %v74
    %227 = vadd.xlane.f32.xlu0 %v226
    %v228 = vpop.xlane.xlu0 %227
    %v229 = vadd.f32 %v75, %v76
    %230 = vadd.xlane.f32.xlu0 %v229
    %v231 = vpop.xlane.xlu0 %230
    %v232 = vadd.f32 %v77, %v78
    %233 = vadd.xlane.f32.xlu0 %v232
    %v234 = vpop.xlane.xlu0 %233
    %v235 = vadd.f32 %v79, %v80
    %236 = vadd.xlane.f32.xlu0 %v235
    %v237 = vpop.xlane.xlu0 %236
    %v238 = vadd.f32 %v81, %v82
    %239 = vadd.xlane.f32.xlu0 %v238
    %v240 = vpop.xlane.xlu0 %239
    %v241 = vadd.f32 %v83, %v84
    %242 = vadd.xlane.f32.xlu0 %v241
    %v243 = vpop.xlane.xlu0 %242
    %v244 = vadd.f32 %v85, %v86
    %245 = vadd.xlane.f32.xlu0 %v244
    %v246 = vpop.xlane.xlu0 %245
    %v247 = vadd.f32 %v87, %v88
    %248 = vadd.xlane.f32.xlu0 %v247
    %v249 = vpop.xlane.xlu0 %248
    %v250 = vadd.f32 %v89, %v90
    %251 = vadd.xlane.f32.xlu0 %v250
    %v252 = vpop.xlane.xlu0 %251
    %v253 = vadd.f32 %v91, %v92
    %254 = vadd.xlane.f32.xlu0 %v253
    %v255 = vpop.xlane.xlu0 %254
    %v256 = vadd.f32 %v93, %v94
    %257 = vadd.xlane.f32.xlu0 %v256
    %v258 = vpop.xlane.xlu0 %257
    %v259 = vadd.f32 %v95, %v96
    %260 = vadd.xlane.f32.xlu0 %v259
    %v261 = vpop.xlane.xlu0 %260
    %v262 = vadd.f32 %v97, %v98
    %263 = vadd.xlane.f32.xlu0 %v262
    %v264 = vpop.xlane.xlu0 %263
    %v265 = vadd.f32 %v99, %v100
    %266 = vadd.xlane.f32.xlu0 %v265
    %v267 = vpop.xlane.xlu0 %266
    %v268 = vadd.f32 %v101, %v102
    %269 = vadd.xlane.f32.xlu0 %v268
    %v270 = vpop.xlane.xlu0 %269
    %v271 = vadd.f32 %v103, %v104
    %272 = vadd.xlane.f32.xlu0 %v271
    %v273 = vpop.xlane.xlu0 %272
    %v274 = vadd.f32 %v105, %v106
    %275 = vadd.xlane.f32.xlu0 %v274
    %v276 = vpop.xlane.xlu0 %275
    %v277 = vadd.f32 %v107, %v108
    %278 = vadd.xlane.f32.xlu0 %v277
    %v279 = vpop.xlane.xlu0 %278
    %v280 = vadd.f32 %v109, %v110
    %281 = vadd.xlane.f32.xlu0 %v280
    %v282 = vpop.xlane.xlu0 %281
    %v283 = vadd.f32 %v111, %v112
    %284 = vadd.xlane.f32.xlu0 %v283
    %v285 = vpop.xlane.xlu0 %284
    %v286 = vadd.f32 %v113, %v114
    %287 = vadd.xlane.f32.xlu0 %v286
    %v288 = vpop.xlane.xlu0 %287
    %v289 = vadd.f32 %v115, %v116
    %290 = vadd.xlane.f32.xlu0 %v289
    %v291 = vpop.xlane.xlu0 %290
    %v292 = vadd.f32 %v117, %v118
    %293 = vadd.xlane.f32.xlu0 %v292
    %v294 = vpop.xlane.xlu0 %293
    %v295 = vadd.f32 %v119, %v120
    %296 = vadd.xlane.f32.xlu0 %v295
    %v297 = vpop.xlane.xlu0 %296
    %v298 = vadd.f32 %v121, %v122
    %299 = vadd.xlane.f32.xlu0 %v298
    %v300 = vpop.xlane.xlu0 %299
    %v301 = vadd.f32 %v123, %v124
    %302 = vadd.xlane.f32.xlu0 %v301
    %v303 = vpop.xlane.xlu0 %302
    %v304 = vadd.f32 %v125, %v126
    %305 = vadd.xlane.f32.xlu0 %v304
    %v306 = vpop.xlane.xlu0 %305
    %v307 = vadd.f32 %v127, %v128
    %308 = vadd.xlane.f32.xlu0 %v307
    %v309 = vpop.xlane.xlu0 %308
    %v310 = vadd.f32 %v129, %v130
    %311 = vadd.xlane.f32.xlu0 %v310
    %v312 = vpop.xlane.xlu0 %311
    %v313 = vadd.f32 %v131, %v132
    %314 = vadd.xlane.f32.xlu0 %v313
    %v315 = vpop.xlane.xlu0 %314
    %v316 = vadd.f32 %v133, %v134
    %317 = vadd.xlane.f32.xlu0 %v316
    %v318 = vpop.xlane.xlu0 %317
    %v319 = vadd.f32 %v135, %v136
    %320 = vadd.xlane.f32.xlu0 %v319
    %v321 = vpop.xlane.xlu0 %320
    %v322 = vadd.f32 %v137, %v138
    %323 = vadd.xlane.f32.xlu0 %v322
    %v324 = vpop.xlane.xlu0 %323
    %v325 = vadd.f32 %v139, %v140
    %326 = vadd.xlane.f32.xlu0 %v325
    %v327 = vpop.xlane.xlu0 %326
    %v328 = vadd.f32 %v141, %v142
    %329 = vadd.xlane.f32.xlu0 %v328
    %v330 = vpop.xlane.xlu0 %329
    %v331 = vadd.f32 %v143, %v144
    %332 = vadd.xlane.f32.xlu0 %v331
    %v333 = vpop.xlane.xlu0 %332
    %v334 = vadd.f32 %v145, %v146
    %335 = vadd.xlane.f32.xlu0 %v334
    %v336 = vpop.xlane.xlu0 %335
    %v337 = vadd.f32 %v147, %v148
    %338 = vadd.xlane.f32.xlu0 %v337
    %v339 = vpop.xlane.xlu0 %338
    %v340 = vadd.f32 %v149, %v150
    %341 = vadd.xlane.f32.xlu0 %v340
    %v342 = vpop.xlane.xlu0 %341
    %vm343 = vcmask 7168
    %v344 = vsel %vm343, %v153, 0.0
    %v345 = vsel %vm343, %v156, 0.0
    %v346 = vadd.f32 %v344, %v345
    %v347 = vsel %vm343, %v159, 0.0
    %v348 = vadd.f32 %v346, %v347
    %v349 = vsel %vm343, %v162, 0.0
    %v350 = vadd.f32 %v348, %v349
    %v351 = vsel %vm343, %v165, 0.0
    %v352 = vadd.f32 %v350, %v351
    %v353 = vsel %vm343, %v168, 0.0
    %v354 = vadd.f32 %v352, %v353
    %v355 = vsel %vm343, %v171, 0.0
    %v356 = vadd.f32 %v354, %v355
    %v357 = vsel %vm343, %v174, 0.0
    %v358 = vadd.f32 %v356, %v357
    %v359 = vsel %vm343, %v177, 0.0
    %v360 = vadd.f32 %v358, %v359
    %v361 = vsel %vm343, %v180, 0.0
    %v362 = vadd.f32 %v360, %v361
    %v363 = vsel %vm343, %v183, 0.0
    %v364 = vadd.f32 %v362, %v363
    %v365 = vsel %vm343, %v186, 0.0
    %v366 = vadd.f32 %v364, %v365
    %v367 = vsel %vm343, %v189, 0.0
    %v368 = vadd.f32 %v366, %v367
    %v369 = vsel %vm343, %v192, 0.0
    %v370 = vadd.f32 %v368, %v369
    %v371 = vsel %vm343, %v195, 0.0
    %v372 = vadd.f32 %v370, %v371
    %v373 = vsel %vm343, %v198, 0.0
    %v374 = vadd.f32 %v372, %v373
    %v375 = vsel %vm343, %v201, 0.0
    %v376 = vadd.f32 %v374, %v375
    %v377 = vsel %vm343, %v204, 0.0
    %v378 = vadd.f32 %v376, %v377
    %v379 = vsel %vm343, %v207, 0.0
    %v380 = vadd.f32 %v378, %v379
    %v381 = vsel %vm343, %v210, 0.0
    %v382 = vadd.f32 %v380, %v381
    %v383 = vsel %vm343, %v213, 0.0
    %v384 = vadd.f32 %v382, %v383
    %v385 = vsel %vm343, %v216, 0.0
    %v386 = vadd.f32 %v384, %v385
    %v387 = vsel %vm343, %v219, 0.0
    %v388 = vadd.f32 %v386, %v387
    %v389 = vsel %vm343, %v222, 0.0
    %v390 = vadd.f32 %v388, %v389
    %v391 = vsel %vm343, %v225, 0.0
    %v392 = vadd.f32 %v390, %v391
    %v393 = vsel %vm343, %v228, 0.0
    %v394 = vadd.f32 %v392, %v393
    %v395 = vsel %vm343, %v231, 0.0
    %v396 = vadd.f32 %v394, %v395
    %v397 = vsel %vm343, %v234, 0.0
    %v398 = vadd.f32 %v396, %v397
    %v399 = vsel %vm343, %v237, 0.0
    %v400 = vadd.f32 %v398, %v399
    %v401 = vsel %vm343, %v240, 0.0
    %v402 = vadd.f32 %v400, %v401
    %v403 = vsel %vm343, %v243, 0.0
    %v404 = vadd.f32 %v402, %v403
    %v405 = vsel %vm343, %v246, 0.0
    %v406 = vadd.f32 %v404, %v405
    %v407 = vsel %vm343, %v249, 0.0
    %v408 = vadd.f32 %v406, %v407
    %v409 = vsel %vm343, %v252, 0.0
    %v410 = vadd.f32 %v408, %v409
    %v411 = vsel %vm343, %v255, 0.0
    %v412 = vadd.f32 %v410, %v411
    %v413 = vsel %vm343, %v258, 0.0
    %v414 = vadd.f32 %v412, %v413
    %v415 = vsel %vm343, %v261, 0.0
    %v416 = vadd.f32 %v414, %v415
    %v417 = vsel %vm343, %v264, 0.0
    %v418 = vadd.f32 %v416, %v417
    %v419 = vsel %vm343, %v267, 0.0
    %v420 = vadd.f32 %v418, %v419
    %v421 = vsel %vm343, %v270, 0.0
    %v422 = vadd.f32 %v420, %v421
    %v423 = vsel %vm343, %v273, 0.0
    %v424 = vadd.f32 %v422, %v423
    %v425 = vsel %vm343, %v276, 0.0
    %v426 = vadd.f32 %v424, %v425
    %v427 = vsel %vm343, %v279, 0.0
    %v428 = vadd.f32 %v426, %v427
    %v429 = vsel %vm343, %v282, 0.0
    %v430 = vadd.f32 %v428, %v429
    %v431 = vsel %vm343, %v285, 0.0
    %v432 = vadd.f32 %v430, %v431
    %v433 = vsel %vm343, %v288, 0.0
    %v434 = vadd.f32 %v432, %v433
    %v435 = vsel %vm343, %v291, 0.0
    %v436 = vadd.f32 %v434, %v435
    %v437 = vsel %vm343, %v294, 0.0
    %v438 = vadd.f32 %v436, %v437
    %v439 = vsel %vm343, %v297, 0.0
    %v440 = vadd.f32 %v438, %v439
    %v441 = vsel %vm343, %v300, 0.0
    %v442 = vadd.f32 %v440, %v441
    %v443 = vsel %vm343, %v303, 0.0
    %v444 = vadd.f32 %v442, %v443
    %v445 = vsel %vm343, %v306, 0.0
    %v446 = vadd.f32 %v444, %v445
    %v447 = vsel %vm343, %v309, 0.0
    %v448 = vadd.f32 %v446, %v447
    %v449 = vsel %vm343, %v312, 0.0
    %v450 = vadd.f32 %v448, %v449
    %v451 = vsel %vm343, %v315, 0.0
    %v452 = vadd.f32 %v450, %v451
    %v453 = vsel %vm343, %v318, 0.0
    %v454 = vadd.f32 %v452, %v453
    %v455 = vsel %vm343, %v321, 0.0
    %v456 = vadd.f32 %v454, %v455
    %v457 = vsel %vm343, %v324, 0.0
    %v458 = vadd.f32 %v456, %v457
    %v459 = vsel %vm343, %v327, 0.0
    %v460 = vadd.f32 %v458, %v459
    %v461 = vsel %vm343, %v330, 0.0
    %v462 = vadd.f32 %v460, %v461
    %v463 = vsel %vm343, %v333, 0.0
    %v464 = vadd.f32 %v462, %v463
    %v465 = vsel %vm343, %v336, 0.0
    %v466 = vadd.f32 %v464, %v465
    %v467 = vsel %vm343, %v339, 0.0
    %v468 = vadd.f32 %v466, %v467
    %v469 = vsel %vm343, %v342, 0.0
    %v470 = vadd.f32 %v468, %v469
    %471 = vadd.xlane.f32.xlu0 %v470
    %v472 = vpop.xlane.xlu0 %471
    %v473 = vrot.slane %v472, 4
    %v474 = vadd.f32 %v472, %v473
    %v475 = vrot.slane %v474, 2
    %v476 = vadd.f32 %v474, %v475
    %v477 = vrot.slane %v476, 1
    %v478 = vadd.f32 %v476, %v477
    %s479 = vtos %v478
    %v480 = vrcp.pop 131072.0
    %s481 = vtos %v480
    %s482 = smul.f32 %s479, %s481
    %v483 = vstv %s482
    %v484 = vsub.f32 %v23, %v483
    %v485 = vsub.f32 %v24, %v483
    %v486 = vsub.f32 %v25, %v483
    %v487 = vsub.f32 %v26, %v483
    %v488 = vsub.f32 %v27, %v483
    %v489 = vsub.f32 %v28, %v483
    %v490 = vsub.f32 %v29, %v483
    %v491 = vsub.f32 %v30, %v483
    %v492 = vsub.f32 %v31, %v483
    %v493 = vsub.f32 %v32, %v483
    %v494 = vsub.f32 %v33, %v483
    %v495 = vsub.f32 %v34, %v483
    %v496 = vsub.f32 %v35, %v483
    %v497 = vsub.f32 %v36, %v483
    %v498 = vsub.f32 %v37, %v483
    %v499 = vsub.f32 %v38, %v483
    %v500 = vsub.f32 %v39, %v483
    %v501 = vsub.f32 %v40, %v483
    %v502 = vsub.f32 %v41, %v483
    %v503 = vsub.f32 %v42, %v483
    %v504 = vsub.f32 %v43, %v483
    %v505 = vsub.f32 %v44, %v483
    %v506 = vsub.f32 %v45, %v483
    %v507 = vsub.f32 %v46, %v483
    %v508 = vsub.f32 %v47, %v483
    %v509 = vsub.f32 %v48, %v483
    %v510 = vsub.f32 %v49, %v483
    %v511 = vsub.f32 %v50, %v483
    %v512 = vsub.f32 %v51, %v483
    %v513 = vsub.f32 %v52, %v483
    %v514 = vsub.f32 %v53, %v483
    %v515 = vsub.f32 %v54, %v483
    %v516 = vsub.f32 %v55, %v483
    %v517 = vsub.f32 %v56, %v483
    %v518 = vsub.f32 %v57, %v483
    %v519 = vsub.f32 %v58, %v483
    %v520 = vsub.f32 %v59, %v483
    %v521 = vsub.f32 %v60, %v483
    %v522 = vsub.f32 %v61, %v483
    %v523 = vsub.f32 %v62, %v483
    %v524 = vsub.f32 %v63, %v483
    %v525 = vsub.f32 %v64, %v483
    %v526 = vsub.f32 %v65, %v483
    %v527 = vsub.f32 %v66, %v483
    %v528 = vsub.f32 %v67, %v483
    %v529 = vsub.f32 %v68, %v483
    %v530 = vsub.f32 %v69, %v483
    %v531 = vsub.f32 %v70, %v483
    %v532 = vsub.f32 %v71, %v483
    %v533 = vsub.f32 %v72, %v483
    %v534 = vsub.f32 %v73, %v483
    %v535 = vsub.f32 %v74, %v483
    %v536 = vsub.f32 %v75, %v483
    %v537 = vsub.f32 %v76, %v483
    %v538 = vsub.f32 %v77, %v483
    %v539 = vsub.f32 %v78, %v483
    %v540 = vsub.f32 %v79, %v483
    %v541 = vsub.f32 %v80, %v483
    %v542 = vsub.f32 %v81, %v483
    %v543 = vsub.f32 %v82, %v483
    %v544 = vsub.f32 %v83, %v483
    %v545 = vsub.f32 %v84, %v483
    %v546 = vsub.f32 %v85, %v483
    %v547 = vsub.f32 %v86, %v483
    %v548 = vsub.f32 %v87, %v483
    %v549 = vsub.f32 %v88, %v483
    %v550 = vsub.f32 %v89, %v483
    %v551 = vsub.f32 %v90, %v483
    %v552 = vsub.f32 %v91, %v483
    %v553 = vsub.f32 %v92, %v483
    %v554 = vsub.f32 %v93, %v483
    %v555 = vsub.f32 %v94, %v483
    %v556 = vsub.f32 %v95, %v483
    %v557 = vsub.f32 %v96, %v483
    %v558 = vsub.f32 %v97, %v483
    %v559 = vsub.f32 %v98, %v483
    %v560 = vsub.f32 %v99, %v483
    %v561 = vsub.f32 %v100, %v483
    %v562 = vsub.f32 %v101, %v483
    %v563 = vsub.f32 %v102, %v483
    %v564 = vsub.f32 %v103, %v483
    %v565 = vsub.f32 %v104, %v483
    %v566 = vsub.f32 %v105, %v483
    %v567 = vsub.f32 %v106, %v483
    %v568 = vsub.f32 %v107, %v483
    %v569 = vsub.f32 %v108, %v483
    %v570 = vsub.f32 %v109, %v483
    %v571 = vsub.f32 %v110, %v483
    %v572 = vsub.f32 %v111, %v483
    %v573 = vsub.f32 %v112, %v483
    %v574 = vsub.f32 %v113, %v483
    %v575 = vsub.f32 %v114, %v483
    %v576 = vsub.f32 %v115, %v483
    %v577 = vsub.f32 %v116, %v483
    %v578 = vsub.f32 %v117, %v483
    %v579 = vsub.f32 %v118, %v483
    %v580 = vsub.f32 %v119, %v483
    %v581 = vsub.f32 %v120, %v483
    %v582 = vsub.f32 %v121, %v483
    %v583 = vsub.f32 %v122, %v483
    %v584 = vsub.f32 %v123, %v483
    %v585 = vsub.f32 %v124, %v483
    %v586 = vsub.f32 %v125, %v483
    %v587 = vsub.f32 %v126, %v483
    %v588 = vsub.f32 %v127, %v483
    %v589 = vsub.f32 %v128, %v483
    %v590 = vsub.f32 %v129, %v483
    %v591 = vsub.f32 %v130, %v483
    %v592 = vsub.f32 %v131, %v483
    %v593 = vsub.f32 %v132, %v483
    %v594 = vsub.f32 %v133, %v483
    %v595 = vsub.f32 %v134, %v483
    %v596 = vsub.f32 %v135, %v483
    %v597 = vsub.f32 %v136, %v483
    %v598 = vsub.f32 %v137, %v483
    %v599 = vsub.f32 %v138, %v483
    %v600 = vsub.f32 %v139, %v483
    %v601 = vsub.f32 %v140, %v483
    %v602 = vsub.f32 %v141, %v483
    %v603 = vsub.f32 %v142, %v483
    %v604 = vsub.f32 %v143, %v483
    %v605 = vsub.f32 %v144, %v483
    %v606 = vsub.f32 %v145, %v483
    %v607 = vsub.f32 %v146, %v483
    %v608 = vsub.f32 %v147, %v483
    %v609 = vsub.f32 %v148, %v483
    %v610 = vsub.f32 %v149, %v483
    %v611 = vsub.f32 %v150, %v483
    %612 = vst [vmem:[#allocation5] sm:$0xff] %v484
    %613 = vst [vmem:[#allocation5 + $0x8] sm:$0xff] %v485
    %614 = vst [vmem:[#allocation5 + $0x10] sm:$0xff] %v486
    %615 = vst [vmem:[#allocation5 + $0x18] sm:$0xff] %v487
    %616 = vst [vmem:[#allocation5 + $0x20] sm:$0xff] %v488
    %617 = vst [vmem:[#allocation5 + $0x28] sm:$0xff] %v489
    %618 = vst [vmem:[#allocation5 + $0x30] sm:$0xff] %v490
    %619 = vst [vmem:[#allocation5 + $0x38] sm:$0xff] %v491
    %620 = vst [vmem:[#allocation5 + $0x40] sm:$0xff] %v492
    %621 = vst [vmem:[#allocation5 + $0x48] sm:$0xff] %v493
    %622 = vst [vmem:[#allocation5 + $0x50] sm:$0xff] %v494
    %623 = vst [vmem:[#allocation5 + $0x58] sm:$0xff] %v495
    %624 = vst [vmem:[#allocation5 + $0x60] sm:$0xff] %v496
    %625 = vst [vmem:[#allocation5 + $0x68] sm:$0xff] %v497
    %626 = vst [vmem:[#allocation5 + $0x70] sm:$0xff] %v498
    %627 = vst [vmem:[#allocation5 + $0x78] sm:$0xff] %v499
    %628 = vst [vmem:[#allocation5 + $0x80] sm:$0xff] %v500
    %629 = vst [vmem:[#allocation5 + $0x88] sm:$0xff] %v501
    %630 = vst [vmem:[#allocation5 + $0x90] sm:$0xff] %v502
    %631 = vst [vmem:[#allocation5 + $0x98] sm:$0xff] %v503
    %632 = vst [vmem:[#allocation5 + $0xa0] sm:$0xff] %v504
    %633 = vst [vmem:[#allocation5 + $0xa8] sm:$0xff] %v505
    %634 = vst [vmem:[#allocation5 + $0xb0] sm:$0xff] %v506
    %635 = vst [vmem:[#allocation5 + $0xb8] sm:$0xff] %v507
    %636 = vst [vmem:[#allocation5 + $0xc0] sm:$0xff] %v508
    %637 = vst [vmem:[#allocation5 + $0xc8] sm:$0xff] %v509
    %638 = vst [vmem:[#allocation5 + $0xd0] sm:$0xff] %v510
    %639 = vst [vmem:[#allocation5 + $0xd8] sm:$0xff] %v511
    %640 = vst [vmem:[#allocation5 + $0xe0] sm:$0xff] %v512
    %641 = vst [vmem:[#allocation5 + $0xe8] sm:$0xff] %v513
    %642 = vst [vmem:[#allocation5 + $0xf0] sm:$0xff] %v514
    %643 = vst [vmem:[#allocation5 + $0xf8] sm:$0xff] %v515
    %644 = vst [vmem:[#allocation5 + $0x100] sm:$0xff] %v516
    %645 = vst [vmem:[#allocation5 + $0x108] sm:$0xff] %v517
    %646 = vst [vmem:[#allocation5 + $0x110] sm:$0xff] %v518
    %647 = vst [vmem:[#allocation5 + $0x118] sm:$0xff] %v519
    %648 = vst [vmem:[#allocation5 + $0x120] sm:$0xff] %v520
    %649 = vst [vmem:[#allocation5 + $0x128] sm:$0xff] %v521
    %650 = vst [vmem:[#allocation5 + $0x130] sm:$0xff] %v522
    %651 = vst [vmem:[#allocation5 + $0x138] sm:$0xff] %v523
    %652 = vst [vmem:[#allocation5 + $0x140] sm:$0xff] %v524
    %653 = vst [vmem:[#allocation5 + $0x148] sm:$0xff] %v525
    %654 = vst [vmem:[#allocation5 + $0x150] sm:$0xff] %v526
    %655 = vst [vmem:[#allocation5 + $0x158] sm:$0xff] %v527
    %656 = vst [vmem:[#allocation5 + $0x160] sm:$0xff] %v528
    %657 = vst [vmem:[#allocation5 + $0x168] sm:$0xff] %v529
    %658 = vst [vmem:[#allocation5 + $0x170] sm:$0xff] %v530
    %659 = vst [vmem:[#allocation5 + $0x178] sm:$0xff] %v531
    %660 = vst [vmem:[#allocation5 + $0x180] sm:$0xff] %v532
    %661 = vst [vmem:[#allocation5 + $0x188] sm:$0xff] %v533
    %662 = vst [vmem:[#allocation5 + $0x190] sm:$0xff] %v534
    %663 = vst [vmem:[#allocation5 + $0x198] sm:$0xff] %v535
    %664 = vst [vmem:[#allocation5 + $0x1a0] sm:$0xff] %v536
    %665 = vst [vmem:[#allocation5 + $0x1a8] sm:$0xff] %v537
    %666 = vst [vmem:[#allocation5 + $0x1b0] sm:$0xff] %v538
    %667 = vst [vmem:[#allocation5 + $0x1b8] sm:$0xff] %v539
    %668 = vst [vmem:[#allocation5 + $0x1c0] sm:$0xff] %v540
    %669 = vst [vmem:[#allocation5 + $0x1c8] sm:$0xff] %v541
    %670 = vst [vmem:[#allocation5 + $0x1d0] sm:$0xff] %v542
    %671 = vst [vmem:[#allocation5 + $0x1d8] sm:$0xff] %v543
    %672 = vst [vmem:[#allocation5 + $0x1e0] sm:$0xff] %v544
    %673 = vst [vmem:[#allocation5 + $0x1e8] sm:$0xff] %v545
    %674 = vst [vmem:[#allocation5 + $0x1f0] sm:$0xff] %v546
    %675 = vst [vmem:[#allocation5 + $0x1f8] sm:$0xff] %v547
    %676 = vst [vmem:[#allocation5 + $0x200] sm:$0xff] %v548
    %677 = vst [vmem:[#allocation5 + $0x208] sm:$0xff] %v549
    %678 = vst [vmem:[#allocation5 + $0x210] sm:$0xff] %v550
    %679 = vst [vmem:[#allocation5 + $0x218] sm:$0xff] %v551
    %680 = vst [vmem:[#allocation5 + $0x220] sm:$0xff] %v552
    %681 = vst [vmem:[#allocation5 + $0x228] sm:$0xff] %v553
    %682 = vst [vmem:[#allocation5 + $0x230] sm:$0xff] %v554
    %683 = vst [vmem:[#allocation5 + $0x238] sm:$0xff] %v555
    %684 = vst [vmem:[#allocation5 + $0x240] sm:$0xff] %v556
    %685 = vst [vmem:[#allocation5 + $0x248] sm:$0xff] %v557
    %686 = vst [vmem:[#allocation5 + $0x250] sm:$0xff] %v558
    %687 = vst [vmem:[#allocation5 + $0x258] sm:$0xff] %v559
    %688 = vst [vmem:[#allocation5 + $0x260] sm:$0xff] %v560
    %689 = vst [vmem:[#allocation5 + $0x268] sm:$0xff] %v561
    %690 = vst [vmem:[#allocation5 + $0x270] sm:$0xff] %v562
    %691 = vst [vmem:[#allocation5 + $0x278] sm:$0xff] %v563
    %692 = vst [vmem:[#allocation5 + $0x280] sm:$0xff] %v564
    %693 = vst [vmem:[#allocation5 + $0x288] sm:$0xff] %v565
    %694 = vst [vmem:[#allocation5 + $0x290] sm:$0xff] %v566
    %695 = vst [vmem:[#allocation5 + $0x298] sm:$0xff] %v567
    %696 = vst [vmem:[#allocation5 + $0x2a0] sm:$0xff] %v568
    %697 = vst [vmem:[#allocation5 + $0x2a8] sm:$0xff] %v569
    %698 = vst [vmem:[#allocation5 + $0x2b0] sm:$0xff] %v570
    %699 = vst [vmem:[#allocation5 + $0x2b8] sm:$0xff] %v571
    %700 = vst [vmem:[#allocation5 + $0x2c0] sm:$0xff] %v572
    %701 = vst [vmem:[#allocation5 + $0x2c8] sm:$0xff] %v573
    %702 = vst [vmem:[#allocation5 + $0x2d0] sm:$0xff] %v574
    %703 = vst [vmem:[#allocation5 + $0x2d8] sm:$0xff] %v575
    %704 = vst [vmem:[#allocation5 + $0x2e0] sm:$0xff] %v576
    %705 = vst [vmem:[#allocation5 + $0x2e8] sm:$0xff] %v577
    %706 = vst [vmem:[#allocation5 + $0x2f0] sm:$0xff] %v578
    %707 = vst [vmem:[#allocation5 + $0x2f8] sm:$0xff] %v579
    %708 = vst [vmem:[#allocation5 + $0x300] sm:$0xff] %v580
    %709 = vst [vmem:[#allocation5 + $0x308] sm:$0xff] %v581
    %710 = vst [vmem:[#allocation5 + $0x310] sm:$0xff] %v582
    %711 = vst [vmem:[#allocation5 + $0x318] sm:$0xff] %v583
    %712 = vst [vmem:[#allocation5 + $0x320] sm:$0xff] %v584
    %713 = vst [vmem:[#allocation5 + $0x328] sm:$0xff] %v585
    %714 = vst [vmem:[#allocation5 + $0x330] sm:$0xff] %v586
    %715 = vst [vmem:[#allocation5 + $0x338] sm:$0xff] %v587
    %716 = vst [vmem:[#allocation5 + $0x340] sm:$0xff] %v588
    %717 = vst [vmem:[#allocation5 + $0x348] sm:$0xff] %v589
    %718 = vst [vmem:[#allocation5 + $0x350] sm:$0xff] %v590
    %719 = vst [vmem:[#allocation5 + $0x358] sm:$0xff] %v591
    %720 = vst [vmem:[#allocation5 + $0x360] sm:$0xff] %v592
    %721 = vst [vmem:[#allocation5 + $0x368] sm:$0xff] %v593
    %722 = vst [vmem:[#allocation5 + $0x370] sm:$0xff] %v594
    %723 = vst [vmem:[#allocation5 + $0x378] sm:$0xff] %v595
    %724 = vst [vmem:[#allocation5 + $0x380] sm:$0xff] %v596
    %725 = vst [vmem:[#allocation5 + $0x388] sm:$0xff] %v597
    %726 = vst [vmem:[#allocation5 + $0x390] sm:$0xff] %v598
    %727 = vst [vmem:[#allocation5 + $0x398] sm:$0xff] %v599
    %728 = vst [vmem:[#allocation5 + $0x3a0] sm:$0xff] %v600
    %729 = vst [vmem:[#allocation5 + $0x3a8] sm:$0xff] %v601
    %730 = vst [vmem:[#allocation5 + $0x3b0] sm:$0xff] %v602
    %731 = vst [vmem:[#allocation5 + $0x3b8] sm:$0xff] %v603
    %732 = vst [vmem:[#allocation5 + $0x3c0] sm:$0xff] %v604
    %733 = vst [vmem:[#allocation5 + $0x3c8] sm:$0xff] %v605
    %734 = vst [vmem:[#allocation5 + $0x3d0] sm:$0xff] %v606
    %735 = vst [vmem:[#allocation5 + $0x3d8] sm:$0xff] %v607
    %736 = vst [vmem:[#allocation5 + $0x3e0] sm:$0xff] %v608
    %737 = vst [vmem:[#allocation5 + $0x3e8] sm:$0xff] %v609
    %738 = vst [vmem:[#allocation5 + $0x3f0] sm:$0xff] %v610
    %739 = vst [vmem:[#allocation5 + $0x3f8] sm:$0xff] %v611
    // Predicated region
    $region10: #{tpu_custom_call.1} parent=1 // pred_check
      _
    $region11: #{tpu_custom_call.1} parent=1 // pred_check_branch
      %741 = sbr.rel (0) target = $region13
    $region12: #{tpu_custom_call.1} parent=1 // pred_region
      %s743 = ssub.s32 16384, 16384
      %744 = vsyncadd [#allocation4], %s743
      %s745 = sshll.u32 [#allocation5], 4
      %s746 = int_to_ptr.vmem [resolvable:$true] %s745
      %751 = dma.vmem_to_hbm [thread:$0]  %s746, 16384, %s1, [#allocation4], 256, 256, 16
    $region13: #{tpu_custom_call.1} parent=1 // pred_fallthru
      _
    // Predicated region
    $region14: #{tpu_custom_call.1} parent=1 // pred_check
      _
    $region15: #{tpu_custom_call.1} parent=1 // pred_check_branch
      %753 = sbr.rel (0) target = $region17
    $region16: #{tpu_custom_call.1} parent=1 // pred_region
      %754 = dma.done [#allocation4], 16384
    $region17: #{tpu_custom_call.1} parent=1 // pred_fallthru
      _
    %755 = vsyncpa [#allocation3], 1
    %756 = vsyncpa [#allocation4], 1

</llo_original>
